<compile_context>
chip_gen: v5e
topology: v5e:2x2
jax: 0.10.0
libtpu: 0.0.40
codegen_flags: <defaults>
</compile_context>

<pallas_src>
import math

import jax
import jax.numpy as jnp
from jax.experimental import pallas as pl
from jax.experimental.pallas import tpu as pltpu

F32_MIN = float(jnp.finfo(jnp.float32).min)  # matches numpy.finfo(float32).min


def _fastattn_kernel(x_ref, bias_ref, mult_ref,
                     wqk_ref, bqk_ref,
                     wqa_ref, bqa_ref,
                     wka_ref, bka_ref,
                     wt_ref, bt_ref,
                     expand_ref,
                     out_ref):
    # Static sizes
    NB, T, _ = x_ref.shape
    D = wqa_ref.shape[0]
    H = wqa_ref.shape[1]
    d_head = D // H
    inv_sqrt_d = jnp.float32(1.0 / math.sqrt(d_head))

    x = x_ref[...].reshape(NB * T, D)   # (NB*T, D) bf16 (cast in wrapper)
    bias = bias_ref[...]                # (NB, T, 1) f32: 0 (nonpad) / F32_MIN (pad)
    mult = mult_ref[...]                # (NB, T, 1) f32: 1 (nonpad) / 0 (pad)
    expand = expand_ref[...]            # (H, D) f32, expand[h, c] = 1 iff head(c) == h

    # ---- fused query/key projection: (NB*T, D) @ (D, 2D), f32 accumulate ----
    mqk_cat = (jnp.dot(x, wqk_ref[...], preferred_element_type=jnp.float32)
               + bqk_ref[...])
    mq = mqk_cat[:, :D]                 # (NB*T, D) f32
    mk = mqk_cat[:, D:]                 # (NB*T, D) f32
    mq_b = mq.astype(jnp.bfloat16)

    def _pool(scores, values_b16):
        """Masked softmax over T of (NB*T, H) scores, then per-head pooling of
        (NB*T, D) values -> (NB, 1, D)."""
        s = scores.reshape(NB, T, H) * inv_sqrt_d + bias     # additive pad mask
        s_max = jnp.max(s, axis=1, keepdims=True)            # (NB, 1, H)
        e = jnp.exp(s - s_max)                               # (NB, T, H)
        denom = jnp.sum(e, axis=1, keepdims=True)            # (NB, 1, H)
        w = e * pl.reciprocal(denom, approx=True)            # (NB, T, H)
        w = w * mult                                         # zero padded rows
        v = values_b16.reshape(NB, T, D)
        # ph[b,h,d] = sum_t w[b,t,h] * v[b,t,d]  -- K=T contraction on the MXU
        ph = jnp.einsum('bth,btd->bhd', w.astype(jnp.bfloat16), v,
                        preferred_element_type=jnp.float32)  # (NB, H, D)
        # pick head-diagonal blocks: pooled[b,c] = ph[b, head(c), c]
        return jnp.sum(expand[None, :, :] * ph, axis=1, keepdims=True)  # (NB,1,D)

    # ---- query attention pooling -------------------------------------------
    q_scores = (jnp.dot(mq_b, wqa_ref[...], preferred_element_type=jnp.float32)
                + bqa_ref[...])                              # (NB*T, H)
    pooled_q = _pool(q_scores, mq_b)                         # (NB, 1, D)

    # ---- key attention pooling ---------------------------------------------
    mqk = mk.reshape(NB, T, D) * pooled_q                    # (NB, T, D) f32
    mqk_b = mqk.reshape(NB * T, D).astype(jnp.bfloat16)
    k_scores = (jnp.dot(mqk_b, wka_ref[...], preferred_element_type=jnp.float32)
                + bka_ref[...])                              # (NB*T, H)
    pooled_k = _pool(k_scores, mqk_b)                        # (NB, 1, D)

    # ---- output --------------------------------------------------------------
    wv = (pooled_k * mq.reshape(NB, T, D)).reshape(NB * T, D).astype(jnp.bfloat16)
    out = (jnp.dot(wv, wt_ref[...], preferred_element_type=jnp.float32)
           + bt_ref[...] + mq)                               # (NB*T, D)
    out_ref[...] = out.reshape(NB, T, D).astype(out_ref.dtype)


def _physical_vmem():
    try:
        return int(pltpu.get_tpu_info().vmem_capacity_bytes)
    except Exception:
        return 64 * 1024 * 1024


def _vmem_limit_bytes(NB, T, D, H):
    """Working-set estimate for one grid step (upper bound, with headroom)."""
    f32, bf16 = 4, 2
    rows = NB * T
    slab_f32 = rows * D * f32
    slab_bf16 = rows * D * bf16
    weights = ((2 * D * D + D * D + 2 * D * H) * bf16       # wqk, wt, wqa, wka
               + (4 * D + 2 * H) * f32                      # biases
               + H * D * f32)                                # expand
    return int(2 * slab_bf16                                # pipelined x input
               + 2 * slab_f32                               # pipelined output
               + 10 * slab_f32                              # live f32 temporaries
               + weights
               + (2 << 20))                                 # headroom


def _choose_nb(B, T, D, H):
    """Pack NB batches per grid step so the MXU M dimension (NB*T rows) is well
    utilized.  Requires B % NB == 0, T % 8 == 0 (free sublane reshape), and the
    working set to fit a conservative VMEM budget."""
    if T % 8 != 0:
        return 1
    budget = int(_physical_vmem() * 0.6)
    best = 1
    for cand in range(1, B + 1):
        if B % cand:
            continue
        if cand > 1 and cand * T > 512:       # no extra MXU benefit beyond ~512 rows
            continue
        if _vmem_limit_bytes(cand, T, D, H) <= budget:
            best = max(best, cand)
    return best


def fast_self_attention(xs_pad, mask, params, num_heads):
    """xs_pad: (B, T, D) float32; mask: (B, 1, T) with 1=nonpad, 0=pad."""
    B, T, D = xs_pad.shape
    H = num_heads
    d_head = D // H
    out_dtype = xs_pad.dtype

    (wq, bq, wqa, bqa, wk, bk, wka, bka, wt, bt) = params

    # Fused Q|K projection weights; all matmul weights cast to bf16.
    wqk = jnp.concatenate([wq, wk], axis=1).astype(jnp.bfloat16)      # (D, 2D)
    bqk = jnp.concatenate([bq, bk], axis=1).astype(jnp.float32)       # (1, 2D)
    wqa_b = wqa.astype(jnp.bfloat16)                                  # (D, H)
    wka_b = wka.astype(jnp.bfloat16)                                  # (D, H)
    wt_b = wt.astype(jnp.bfloat16)                                    # (D, D)
    bqa_f = bqa.astype(jnp.float32)
    bka_f = bka.astype(jnp.float32)
    bt_f = bt.astype(jnp.float32)

    # Additive padding bias (0 / F32_MIN) and {1,0} multiplier, (B, T, 1).
    mask_t = jnp.transpose(mask.astype(jnp.float32), (0, 2, 1))       # (B, T, 1)
    mask_bias = (1.0 - mask_t) * F32_MIN
    mask_mult = mask_t

    # Head-expansion matrix: expand[h, h*d_head + j] = 1
    expand = jnp.repeat(jnp.eye(H, dtype=jnp.float32), d_head, axis=1)  # (H, D)

    # Activations in bf16 for the MXU (halves HBM traffic for x).
    xs_bf16 = xs_pad.astype(jnp.bfloat16)

    NB = _choose_nb(B, T, D, H)
    grid = (B // NB,)

    # Whole-array, single-buffered VMEM residency for grid-invariant operands.
    def vmem_full():
        return pl.BlockSpec(memory_space=pltpu.MemorySpace.VMEM)

    grid_spec = pltpu.PrefetchScalarGridSpec(
        num_scalar_prefetch=0,
        grid=grid,
        in_specs=[
            pl.BlockSpec((NB, T, D), lambda b: (b, 0, 0)),   # x (bf16)
            pl.BlockSpec((NB, T, 1), lambda b: (b, 0, 0)),   # mask bias
            pl.BlockSpec((NB, T, 1), lambda b: (b, 0, 0)),   # mask mult
            vmem_full(), vmem_full(),                        # wqk, bqk
            vmem_full(), vmem_full(),                        # wqa, bqa
            vmem_full(), vmem_full(),                        # wka, bka
            vmem_full(), vmem_full(),                        # wt, bt
            vmem_full(),                                     # expand
        ],
        out_specs=pl.BlockSpec((NB, T, D), lambda b: (b, 0, 0)),
    )

    vmem_bytes = min(max(_vmem_limit_bytes(NB, T, D, H), 16 * 1024 * 1024),
                     int(_physical_vmem() * 0.85))

    return pl.pallas_call(
        _fastattn_kernel,
        out_shape=jax.ShapeDtypeStruct((B, T, D), out_dtype),
        grid_spec=grid_spec,
        compiler_params=pltpu.CompilerParams(
            dimension_semantics=("parallel",),
            vmem_limit_bytes=vmem_bytes),
    )(xs_bf16, mask_bias, mask_mult,
      wqk, bqk, wqa_b, bqa_f, wka_b, bka_f, wt_b, bt_f, expand)


def _reference(xs_pad, mask, params, num_heads):
    """Pure-JAX replica of the PyTorch forward (for sanity checking)."""
    B, T, D = xs_pad.shape
    H = num_heads
    d = D // H
    (wq, bq, wqa, bqa, wk, bk, wka, bka, wt, bt) = params
    pad = (mask == 0)                               # (B, 1, T)
    mq = xs_pad @ wq + bq
    mk = xs_pad @ wk + bk
    qs = jnp.transpose(mq @ wqa + bqa, (0, 2, 1)) / math.sqrt(d)    # (B, H, T)
    qs = jnp.where(pad, F32_MIN, qs)
    qw = jax.nn.softmax(qs, axis=-1)
    qw = jnp.where(pad, 0.0, qw)[:, :, None, :]                     # (B, H, 1, T)
    ql = jnp.transpose(mq.reshape(B, T, H, d), (0, 2, 1, 3))        # (B, H, T, d)
    pooled_q = (qw @ ql).transpose(0, 2, 1, 3).reshape(B, 1, D)
    mqk = mk * pooled_q
    ks = jnp.transpose(mqk @ wka + bka, (0, 2, 1)) / math.sqrt(d)
    ks = jnp.where(pad, F32_MIN, ks)
    kw = jax.nn.softmax(ks, axis=-1)
    kw = jnp.where(pad, 0.0, kw)[:, :, None, :]
    kl = jnp.transpose(mqk.reshape(B, T, H, d), (0, 2, 1, 3))
    pooled_k = kw @ kl                                              # (B, H, 1, d)
    wv = (pooled_k * ql).transpose(0, 2, 1, 3).reshape(B, T, D)
    return wv @ wt + bt + mq


if __name__ == "__main__":
    B, T, D, H = 2, 8, 32, 4
    key = jax.random.PRNGKey(0)
    kx, *kw = jax.random.split(key, 7)

    xs_pad = jax.random.normal(kx, (B, T, D), dtype=jnp.float32)

    # mask: (B, 1, T), 1 = nonpadding, 0 = padding (batch 1 has 3 padded steps)
    mask = jnp.ones((B, 1, T), dtype=jnp.float32)
    mask = mask.at[1, 0, T - 3:].set(0.0)

    # Deterministic parameters (normal std=0.02 weights, zero biases),
    # stored pre-transposed as (in, out).
    params = (
        jax.random.normal(kw[0], (D, D), jnp.float32) * 0.02, jnp.zeros((1, D), jnp.float32),
        jax.random.normal(kw[1], (D, H), jnp.float32) * 0.02, jnp.zeros((1, H), jnp.float32),
        jax.random.normal(kw[2], (D, D), jnp.float32) * 0.02, jnp.zeros((1, D), jnp.float32),
        jax.random.normal(kw[3], (D, H), jnp.float32) * 0.02, jnp.zeros((1, H), jnp.float32),
        jax.random.normal(kw[4], (D, D), jnp.float32) * 0.02, jnp.zeros((1, D), jnp.float32),
    )

    out = fast_self_attention(xs_pad, mask, params, H)
    out = jax.block_until_ready(out)

    ref = _reference(xs_pad, mask, params, H)
    assert out.shape == (B, T, D)
    # bf16 MXU operands (f32 accumulation) -> slightly looser tolerance.
    assert jnp.allclose(out, ref, rtol=5e-2, atol=5e-3), "mismatch vs reference"

    print("KERNEL_OK")
</pallas_src>

<mosaic_0001>
module attributes {stable_mosaic.version = 11 : i64} {
  func.func @_fastattn_kernel(%arg0: i32, %arg1: memref<2x8x32xbf16, #tpu.memory_space<vmem>>, %arg2: memref<2x8x1xf32, #tpu.memory_space<vmem>>, %arg3: memref<2x8x1xf32, #tpu.memory_space<vmem>>, %arg4: memref<32x64xbf16, #tpu.memory_space<vmem>>, %arg5: memref<1x64xf32, #tpu.memory_space<vmem>>, %arg6: memref<32x4xbf16, #tpu.memory_space<vmem>>, %arg7: memref<1x4xf32, #tpu.memory_space<vmem>>, %arg8: memref<32x4xbf16, #tpu.memory_space<vmem>>, %arg9: memref<1x4xf32, #tpu.memory_space<vmem>>, %arg10: memref<32x32xbf16, #tpu.memory_space<vmem>>, %arg11: memref<1x32xf32, #tpu.memory_space<vmem>>, %arg12: memref<4x32xf32, #tpu.memory_space<vmem>>, %arg13: memref<2x8x32xf32, #tpu.memory_space<vmem>>) attributes {dimension_semantics = [#tpu.dimension_semantics<parallel>], iteration_bounds = array<i64: 1>, scalar_prefetch = 0 : i64, scratch_operands = 0 : i64, tpu.core_type = #tpu.core_type<tc>, window_params = [{transform_indices = @transform_0, window_bounds = array<i64: 2, 8, 32>}, {transform_indices = @transform_1, window_bounds = array<i64: 2, 8, 1>}, {transform_indices = @transform_2, window_bounds = array<i64: 2, 8, 1>}, {pipeline_mode = #tpu.pipeline_mode<synchronous>, transform_indices = @transform_3, window_bounds = array<i64: 32, 64>}, {pipeline_mode = #tpu.pipeline_mode<synchronous>, transform_indices = @transform_4, window_bounds = array<i64: 1, 64>}, {pipeline_mode = #tpu.pipeline_mode<synchronous>, transform_indices = @transform_5, window_bounds = array<i64: 32, 4>}, {pipeline_mode = #tpu.pipeline_mode<synchronous>, transform_indices = @transform_6, window_bounds = array<i64: 1, 4>}, {pipeline_mode = #tpu.pipeline_mode<synchronous>, transform_indices = @transform_7, window_bounds = array<i64: 32, 4>}, {pipeline_mode = #tpu.pipeline_mode<synchronous>, transform_indices = @transform_8, window_bounds = array<i64: 1, 4>}, {pipeline_mode = #tpu.pipeline_mode<synchronous>, transform_indices = @transform_9, window_bounds = array<i64: 32, 32>}, {pipeline_mode = #tpu.pipeline_mode<synchronous>, transform_indices = @transform_10, window_bounds = array<i64: 1, 32>}, {pipeline_mode = #tpu.pipeline_mode<synchronous>, transform_indices = @transform_11, window_bounds = array<i64: 4, 32>}, {transform_indices = @transform_12, window_bounds = array<i64: 2, 8, 32>}]} {
    %c0 = arith.constant 0 : index
    %c0_0 = arith.constant 0 : index
    %c0_1 = arith.constant 0 : index
    %0 = vector.load %arg1[%c0, %c0_0, %c0_1] : memref<2x8x32xbf16, #tpu.memory_space<vmem>>, vector<2x8x32xbf16>
    %1 = vector.shape_cast %0 : vector<2x8x32xbf16> to vector<16x32xbf16>
    %c0_2 = arith.constant 0 : index
    %c0_3 = arith.constant 0 : index
    %c0_4 = arith.constant 0 : index
    %2 = vector.load %arg2[%c0_2, %c0_3, %c0_4] : memref<2x8x1xf32, #tpu.memory_space<vmem>>, vector<2x8x1xf32>
    %c0_5 = arith.constant 0 : index
    %c0_6 = arith.constant 0 : index
    %c0_7 = arith.constant 0 : index
    %3 = vector.load %arg3[%c0_5, %c0_6, %c0_7] : memref<2x8x1xf32, #tpu.memory_space<vmem>>, vector<2x8x1xf32>
    %c0_8 = arith.constant 0 : index
    %c0_9 = arith.constant 0 : index
    %4 = vector.load %arg12[%c0_8, %c0_9] : memref<4x32xf32, #tpu.memory_space<vmem>>, vector<4x32xf32>
    %c0_10 = arith.constant 0 : index
    %c0_11 = arith.constant 0 : index
    %5 = vector.load %arg4[%c0_10, %c0_11] : memref<32x64xbf16, #tpu.memory_space<vmem>>, vector<32x64xbf16>
    %cst = arith.constant dense<0.000000e+00> : vector<16x64xf32>
    %6 = tpu.matmul %1, %5, %cst {dimension_numbers = #tpu.dot_dimension_numbers<[1], [0], [0], [1], [0, 0, 1, 1], [], []>} : vector<16x32xbf16>, vector<32x64xbf16>, vector<16x64xf32> -> vector<16x64xf32>
    %c0_12 = arith.constant 0 : index
    %c0_13 = arith.constant 0 : index
    %7 = vector.load %arg5[%c0_12, %c0_13] : memref<1x64xf32, #tpu.memory_space<vmem>>, vector<1x64xf32>
    %8 = vector.broadcast %7 : vector<1x64xf32> to vector<16x64xf32>
    %9 = arith.addf %6, %8 : vector<16x64xf32>
    %10 = vector.extract_strided_slice %9 {offsets = [0, 0], sizes = [16, 32], strides = [1, 1]} : vector<16x64xf32> to vector<16x32xf32>
    %11 = vector.extract_strided_slice %9 {offsets = [0, 32], sizes = [16, 32], strides = [1, 1]} : vector<16x64xf32> to vector<16x32xf32>
    %12 = arith.truncf %10 : vector<16x32xf32> to vector<16x32xbf16>
    %c0_14 = arith.constant 0 : index
    %c0_15 = arith.constant 0 : index
    %13 = vector.load %arg6[%c0_14, %c0_15] : memref<32x4xbf16, #tpu.memory_space<vmem>>, vector<32x4xbf16>
    %cst_16 = arith.constant dense<0.000000e+00> : vector<16x4xf32>
    %14 = tpu.matmul %12, %13, %cst_16 {dimension_numbers = #tpu.dot_dimension_numbers<[1], [0], [0], [1], [0, 0, 1, 1], [], []>} : vector<16x32xbf16>, vector<32x4xbf16>, vector<16x4xf32> -> vector<16x4xf32>
    %c0_17 = arith.constant 0 : index
    %c0_18 = arith.constant 0 : index
    %15 = vector.load %arg7[%c0_17, %c0_18] : memref<1x4xf32, #tpu.memory_space<vmem>>, vector<1x4xf32>
    %16 = vector.broadcast %15 : vector<1x4xf32> to vector<16x4xf32>
    %17 = arith.addf %14, %16 : vector<16x4xf32>
    %18 = vector.shape_cast %17 : vector<16x4xf32> to vector<2x8x4xf32>
    %cst_19 = arith.constant 0.353553385 : f32
    %19 = vector.broadcast %cst_19 : f32 to vector<2x8x4xf32>
    %20 = arith.mulf %18, %19 : vector<2x8x4xf32>
    %21 = vector.broadcast %2 : vector<2x8x1xf32> to vector<2x8x4xf32>
    %22 = arith.addf %20, %21 : vector<2x8x4xf32>
    %cst_20 = arith.constant dense<0xFF800000> : vector<2x4xf32>
    %23 = vector.multi_reduction <maximumf>, %22, %cst_20 [1] : vector<2x8x4xf32> to vector<2x4xf32>
    %24 = vector.shape_cast %23 : vector<2x4xf32> to vector<2x1x4xf32>
    %25 = vector.broadcast %24 : vector<2x1x4xf32> to vector<2x8x4xf32>
    %26 = arith.subf %22, %25 : vector<2x8x4xf32>
    %27 = math.exp %26 : vector<2x8x4xf32>
    %cst_21 = arith.constant dense<0.000000e+00> : vector<2x4xf32>
    %28 = vector.multi_reduction <add>, %27, %cst_21 [1] : vector<2x8x4xf32> to vector<2x4xf32>
    %29 = vector.shape_cast %28 : vector<2x4xf32> to vector<2x1x4xf32>
    %30 = tpu.reciprocal %29 {approx = true} : vector<2x1x4xf32> -> vector<2x1x4xf32>
    %31 = vector.broadcast %30 : vector<2x1x4xf32> to vector<2x8x4xf32>
    %32 = arith.mulf %27, %31 : vector<2x8x4xf32>
    %33 = vector.broadcast %3 : vector<2x8x1xf32> to vector<2x8x4xf32>
    %34 = arith.mulf %32, %33 : vector<2x8x4xf32>
    %35 = vector.shape_cast %12 : vector<16x32xbf16> to vector<2x8x32xbf16>
    %36 = arith.truncf %34 : vector<2x8x4xf32> to vector<2x8x4xbf16>
    "tpu.trace_start"() <{level = 10 : i32, message = "bth,btd->bhd"}> : () -> ()
    %cst_22 = arith.constant dense<0.000000e+00> : vector<2x4x32xf32>
    %37 = tpu.matmul %36, %35, %cst_22 {dimension_numbers = #tpu.dot_dimension_numbers<[1], [1], [2], [2], [0, 0, 0, 2, 1, 2], [0], [0]>} : vector<2x8x4xbf16>, vector<2x8x32xbf16>, vector<2x4x32xf32> -> vector<2x4x32xf32>
    "tpu.trace_stop"() : () -> ()
    %38 = vector.shape_cast %4 : vector<4x32xf32> to vector<1x4x32xf32>
    %39 = vector.broadcast %38 : vector<1x4x32xf32> to vector<2x4x32xf32>
    %40 = arith.mulf %39, %37 : vector<2x4x32xf32>
    %cst_23 = arith.constant dense<0.000000e+00> : vector<2x32xf32>
    %41 = vector.multi_reduction <add>, %40, %cst_23 [1] : vector<2x4x32xf32> to vector<2x32xf32>
    %42 = vector.shape_cast %41 : vector<2x32xf32> to vector<2x1x32xf32>
    %43 = vector.shape_cast %11 : vector<16x32xf32> to vector<2x8x32xf32>
    %44 = vector.broadcast %42 : vector<2x1x32xf32> to vector<2x8x32xf32>
    %45 = arith.mulf %43, %44 : vector<2x8x32xf32>
    %46 = vector.shape_cast %45 : vector<2x8x32xf32> to vector<16x32xf32>
    %47 = arith.truncf %46 : vector<16x32xf32> to vector<16x32xbf16>
    %c0_24 = arith.constant 0 : index
    %c0_25 = arith.constant 0 : index
    %48 = vector.load %arg8[%c0_24, %c0_25] : memref<32x4xbf16, #tpu.memory_space<vmem>>, vector<32x4xbf16>
    %cst_26 = arith.constant dense<0.000000e+00> : vector<16x4xf32>
    %49 = tpu.matmul %47, %48, %cst_26 {dimension_numbers = #tpu.dot_dimension_numbers<[1], [0], [0], [1], [0, 0, 1, 1], [], []>} : vector<16x32xbf16>, vector<32x4xbf16>, vector<16x4xf32> -> vector<16x4xf32>
    %c0_27 = arith.constant 0 : index
    %c0_28 = arith.constant 0 : index
    %50 = vector.load %arg9[%c0_27, %c0_28] : memref<1x4xf32, #tpu.memory_space<vmem>>, vector<1x4xf32>
    %51 = vector.broadcast %50 : vector<1x4xf32> to vector<16x4xf32>
    %52 = arith.addf %49, %51 : vector<16x4xf32>
    %53 = vector.shape_cast %52 : vector<16x4xf32> to vector<2x8x4xf32>
    %cst_29 = arith.constant 0.353553385 : f32
    %54 = vector.broadcast %cst_29 : f32 to vector<2x8x4xf32>
    %55 = arith.mulf %53, %54 : vector<2x8x4xf32>
    %56 = vector.broadcast %2 : vector<2x8x1xf32> to vector<2x8x4xf32>
    %57 = arith.addf %55, %56 : vector<2x8x4xf32>
    %cst_30 = arith.constant dense<0xFF800000> : vector<2x4xf32>
    %58 = vector.multi_reduction <maximumf>, %57, %cst_30 [1] : vector<2x8x4xf32> to vector<2x4xf32>
    %59 = vector.shape_cast %58 : vector<2x4xf32> to vector<2x1x4xf32>
    %60 = vector.broadcast %59 : vector<2x1x4xf32> to vector<2x8x4xf32>
    %61 = arith.subf %57, %60 : vector<2x8x4xf32>
    %62 = math.exp %61 : vector<2x8x4xf32>
    %cst_31 = arith.constant dense<0.000000e+00> : vector<2x4xf32>
    %63 = vector.multi_reduction <add>, %62, %cst_31 [1] : vector<2x8x4xf32> to vector<2x4xf32>
    %64 = vector.shape_cast %63 : vector<2x4xf32> to vector<2x1x4xf32>
    %65 = tpu.reciprocal %64 {approx = true} : vector<2x1x4xf32> -> vector<2x1x4xf32>
    %66 = vector.broadcast %65 : vector<2x1x4xf32> to vector<2x8x4xf32>
    %67 = arith.mulf %62, %66 : vector<2x8x4xf32>
    %68 = vector.broadcast %3 : vector<2x8x1xf32> to vector<2x8x4xf32>
    %69 = arith.mulf %67, %68 : vector<2x8x4xf32>
    %70 = vector.shape_cast %47 : vector<16x32xbf16> to vector<2x8x32xbf16>
    %71 = arith.truncf %69 : vector<2x8x4xf32> to vector<2x8x4xbf16>
    "tpu.trace_start"() <{level = 10 : i32, message = "bth,btd->bhd"}> : () -> ()
    %cst_32 = arith.constant dense<0.000000e+00> : vector<2x4x32xf32>
    %72 = tpu.matmul %71, %70, %cst_32 {dimension_numbers = #tpu.dot_dimension_numbers<[1], [1], [2], [2], [0, 0, 0, 2, 1, 2], [0], [0]>} : vector<2x8x4xbf16>, vector<2x8x32xbf16>, vector<2x4x32xf32> -> vector<2x4x32xf32>
    "tpu.trace_stop"() : () -> ()
    %73 = vector.shape_cast %4 : vector<4x32xf32> to vector<1x4x32xf32>
    %74 = vector.broadcast %73 : vector<1x4x32xf32> to vector<2x4x32xf32>
    %75 = arith.mulf %74, %72 : vector<2x4x32xf32>
    %cst_33 = arith.constant dense<0.000000e+00> : vector<2x32xf32>
    %76 = vector.multi_reduction <add>, %75, %cst_33 [1] : vector<2x4x32xf32> to vector<2x32xf32>
    %77 = vector.shape_cast %76 : vector<2x32xf32> to vector<2x1x32xf32>
    %78 = vector.shape_cast %10 : vector<16x32xf32> to vector<2x8x32xf32>
    %79 = vector.broadcast %77 : vector<2x1x32xf32> to vector<2x8x32xf32>
    %80 = arith.mulf %79, %78 : vector<2x8x32xf32>
    %81 = vector.shape_cast %80 : vector<2x8x32xf32> to vector<16x32xf32>
    %82 = arith.truncf %81 : vector<16x32xf32> to vector<16x32xbf16>
    %c0_34 = arith.constant 0 : index
    %c0_35 = arith.constant 0 : index
    %83 = vector.load %arg10[%c0_34, %c0_35] : memref<32x32xbf16, #tpu.memory_space<vmem>>, vector<32x32xbf16>
    %cst_36 = arith.constant dense<0.000000e+00> : vector<16x32xf32>
    %84 = tpu.matmul %82, %83, %cst_36 {dimension_numbers = #tpu.dot_dimension_numbers<[1], [0], [0], [1], [0, 0, 1, 1], [], []>} : vector<16x32xbf16>, vector<32x32xbf16>, vector<16x32xf32> -> vector<16x32xf32>
    %c0_37 = arith.constant 0 : index
    %c0_38 = arith.constant 0 : index
    %85 = vector.load %arg11[%c0_37, %c0_38] : memref<1x32xf32, #tpu.memory_space<vmem>>, vector<1x32xf32>
    %86 = vector.broadcast %85 : vector<1x32xf32> to vector<16x32xf32>
    %87 = arith.addf %84, %86 : vector<16x32xf32>
    %88 = arith.addf %87, %10 : vector<16x32xf32>
    %89 = vector.shape_cast %88 : vector<16x32xf32> to vector<2x8x32xf32>
    %c0_39 = arith.constant 0 : index
    %c0_40 = arith.constant 0 : index
    %c0_41 = arith.constant 0 : index
    %90 = vector.load %arg13[%c0_39, %c0_40, %c0_41] : memref<2x8x32xf32, #tpu.memory_space<vmem>>, vector<2x8x32xf32>
    tpu.vector_store %arg13[%c0_39, %c0_40, %c0_41], %89 {strides = array<i32>} : memref<2x8x32xf32, #tpu.memory_space<vmem>>, vector<2x8x32xf32>,
    return
  }
  func.func @transform_0(%arg0: i32) -> (i32, i32, i32) {
    %c0_i32 = arith.constant 0 : i32
    %c0_i32_0 = arith.constant 0 : i32
    %c0_i32_1 = arith.constant 0 : i32
    return %arg0, %c0_i32, %c0_i32_0 : i32, i32, i32
  }
  func.func @transform_1(%arg0: i32) -> (i32, i32, i32) {
    %c0_i32 = arith.constant 0 : i32
    %c0_i32_0 = arith.constant 0 : i32
    %c0_i32_1 = arith.constant 0 : i32
    return %arg0, %c0_i32, %c0_i32_0 : i32, i32, i32
  }
  func.func @transform_2(%arg0: i32) -> (i32, i32, i32) {
    %c0_i32 = arith.constant 0 : i32
    %c0_i32_0 = arith.constant 0 : i32
    %c0_i32_1 = arith.constant 0 : i32
    return %arg0, %c0_i32, %c0_i32_0 : i32, i32, i32
  }
  func.func @transform_3(%arg0: i32) -> (i32, i32) {
    %c0_i32 = arith.constant 0 : i32
    %c0_i32_0 = arith.constant 0 : i32
    %c0_i32_1 = arith.constant 0 : i32
    return %c0_i32, %c0_i32_0 : i32, i32
  }
  func.func @transform_4(%arg0: i32) -> (i32, i32) {
    %c0_i32 = arith.constant 0 : i32
    %c0_i32_0 = arith.constant 0 : i32
    %c0_i32_1 = arith.constant 0 : i32
    return %c0_i32, %c0_i32_0 : i32, i32
  }
  func.func @transform_5(%arg0: i32) -> (i32, i32) {
    %c0_i32 = arith.constant 0 : i32
    %c0_i32_0 = arith.constant 0 : i32
    %c0_i32_1 = arith.constant 0 : i32
    return %c0_i32, %c0_i32_0 : i32, i32
  }
  func.func @transform_6(%arg0: i32) -> (i32, i32) {
    %c0_i32 = arith.constant 0 : i32
    %c0_i32_0 = arith.constant 0 : i32
    %c0_i32_1 = arith.constant 0 : i32
    return %c0_i32, %c0_i32_0 : i32, i32
  }
  func.func @transform_7(%arg0: i32) -> (i32, i32) {
    %c0_i32 = arith.constant 0 : i32
    %c0_i32_0 = arith.constant 0 : i32
    %c0_i32_1 = arith.constant 0 : i32
    return %c0_i32, %c0_i32_0 : i32, i32
  }
  func.func @transform_8(%arg0: i32) -> (i32, i32) {
    %c0_i32 = arith.constant 0 : i32
    %c0_i32_0 = arith.constant 0 : i32
    %c0_i32_1 = arith.constant 0 : i32
    return %c0_i32, %c0_i32_0 : i32, i32
  }
  func.func @transform_9(%arg0: i32) -> (i32, i32) {
    %c0_i32 = arith.constant 0 : i32
    %c0_i32_0 = arith.constant 0 : i32
    %c0_i32_1 = arith.constant 0 : i32
    return %c0_i32, %c0_i32_0 : i32, i32
  }
  func.func @transform_10(%arg0: i32) -> (i32, i32) {
    %c0_i32 = arith.constant 0 : i32
    %c0_i32_0 = arith.constant 0 : i32
    %c0_i32_1 = arith.constant 0 : i32
    return %c0_i32, %c0_i32_0 : i32, i32
  }
  func.func @transform_11(%arg0: i32) -> (i32, i32) {
    %c0_i32 = arith.constant 0 : i32
    %c0_i32_0 = arith.constant 0 : i32
    %c0_i32_1 = arith.constant 0 : i32
    return %c0_i32, %c0_i32_0 : i32, i32
  }
  func.func @transform_12(%arg0: i32) -> (i32, i32, i32) {
    %c0_i32 = arith.constant 0 : i32
    %c0_i32_0 = arith.constant 0 : i32
    %c0_i32_1 = arith.constant 0 : i32
    return %arg0, %c0_i32, %c0_i32_0 : i32, i32, i32
  }
}

</mosaic_0001>

<llo_original>
// kernel: tpu_custom_call.1
$region0: #{tpu_custom_call.1}
  #allocation0 [shape = 'u32[]', space=smem, size = 0x4, offset = 0x4, fixed_abs, tag = 'smem constant byte address 0x4 - core index']
  #allocation1 [shape = 'u32[72,128]{1,0:T(1,128)}', space=vmem, size = 0x9000, scoped, tag = 'internal scratch']
  %s0 = inlined_call_operand.vmem [shape: bf16[2,8,32], index: 0, kind: input, shape index: {}]
  %s1 = inlined_call_operand.vmem [shape: f32[2,8,1], index: 1, kind: input, shape index: {}]
  %s2 = inlined_call_operand.vmem [shape: f32[2,8,1], index: 2, kind: input, shape index: {}]
  %s3 = inlined_call_operand.vmem [shape: bf16[32,64], index: 3, kind: input, shape index: {}]
  %s4 = inlined_call_operand.vmem [shape: f32[1,64], index: 4, kind: input, shape index: {}]
  %s5 = inlined_call_operand.vmem [shape: bf16[32,4], index: 5, kind: input, shape index: {}]
  %s6 = inlined_call_operand.vmem [shape: f32[1,4], index: 6, kind: input, shape index: {}]
  %s7 = inlined_call_operand.vmem [shape: bf16[32,4], index: 7, kind: input, shape index: {}]
  %s8 = inlined_call_operand.vmem [shape: f32[1,4], index: 8, kind: input, shape index: {}]
  %s9 = inlined_call_operand.vmem [shape: bf16[32,32], index: 9, kind: input, shape index: {}]
  %s10 = inlined_call_operand.vmem [shape: f32[1,32], index: 10, kind: input, shape index: {}]
  %s11 = inlined_call_operand.vmem [shape: f32[4,32], index: 11, kind: input, shape index: {}]
  %s12 = inlined_call_operand.hbm [shape: f32[2,8,32], index: 12, kind: output, shape index: {}]
  %s13 = sld [smem:[#allocation0]]
  $region58: #{tpu_custom_call.1} parent=0
    _
  %s15 = ssub.s32 1, %s13
  %s16 = scalar_select 0, %s15, %s13
  $region1: #{tpu_custom_call.1} parent=0
    #allocation2 [shape = 'u8[8192]{0}', space=vmem, size = 0x2000, scoped, tag = 'output window, operand 0, single buffered']
    #allocation3 [shape = 's32[1]{0}', space=sflag, size = 0x4, scoped, tag = 'scoped memory for tpu_custom_call.1']
    %17 = vsyncpa [#allocation3], 0
    // Predicated region
    $region2: #{tpu_custom_call.1} parent=1 // pred_check
      _
    $region3: #{tpu_custom_call.1} parent=1 // pred_check_branch
      %19 = sbr.rel (0) target = $region5
    $region4: #{tpu_custom_call.1} parent=1 // pred_region
      _
    $region5: #{tpu_custom_call.1} parent=1 // pred_fallthru
      _
    // Predicated region
    $region6: #{tpu_custom_call.1} parent=1 // pred_check
      _
    $region7: #{tpu_custom_call.1} parent=1 // pred_check_branch
      %21 = sbr.rel (0) target = $region9
    $region8: #{tpu_custom_call.1} parent=1 // pred_region
      _
    $region9: #{tpu_custom_call.1} parent=1 // pred_fallthru
      _
    // Predicated region
    $region10: #{tpu_custom_call.1} parent=1 // pred_check
      _
    $region11: #{tpu_custom_call.1} parent=1 // pred_check_branch
      %23 = sbr.rel (0) target = $region13
    $region12: #{tpu_custom_call.1} parent=1 // pred_region
      _
    $region13: #{tpu_custom_call.1} parent=1 // pred_fallthru
      _
    // Predicated region
    $region14: #{tpu_custom_call.1} parent=1 // pred_check
      _
    $region15: #{tpu_custom_call.1} parent=1 // pred_check_branch
      %25 = sbr.rel (0) target = $region17
    $region16: #{tpu_custom_call.1} parent=1 // pred_region
      _
    $region17: #{tpu_custom_call.1} parent=1 // pred_fallthru
      _
    // Predicated region
    $region18: #{tpu_custom_call.1} parent=1 // pred_check
      _
    $region19: #{tpu_custom_call.1} parent=1 // pred_check_branch
      %27 = sbr.rel (0) target = $region21
    $region20: #{tpu_custom_call.1} parent=1 // pred_region
      _
    $region21: #{tpu_custom_call.1} parent=1 // pred_fallthru
      _
    // Predicated region
    $region22: #{tpu_custom_call.1} parent=1 // pred_check
      _
    $region23: #{tpu_custom_call.1} parent=1 // pred_check_branch
      %29 = sbr.rel (0) target = $region25
    $region24: #{tpu_custom_call.1} parent=1 // pred_region
      _
    $region25: #{tpu_custom_call.1} parent=1 // pred_fallthru
      _
    // Predicated region
    $region26: #{tpu_custom_call.1} parent=1 // pred_check
      _
    $region27: #{tpu_custom_call.1} parent=1 // pred_check_branch
      %31 = sbr.rel (0) target = $region29
    $region28: #{tpu_custom_call.1} parent=1 // pred_region
      _
    $region29: #{tpu_custom_call.1} parent=1 // pred_fallthru
      _
    // Predicated region
    $region30: #{tpu_custom_call.1} parent=1 // pred_check
      _
    $region31: #{tpu_custom_call.1} parent=1 // pred_check_branch
      %33 = sbr.rel (0) target = $region33
    $region32: #{tpu_custom_call.1} parent=1 // pred_region
      _
    $region33: #{tpu_custom_call.1} parent=1 // pred_fallthru
      _
    // Predicated region
    $region34: #{tpu_custom_call.1} parent=1 // pred_check
      _
    $region35: #{tpu_custom_call.1} parent=1 // pred_check_branch
      %35 = sbr.rel (0) target = $region37
    $region36: #{tpu_custom_call.1} parent=1 // pred_region
      _
    $region37: #{tpu_custom_call.1} parent=1 // pred_fallthru
      _
    // Predicated region
    $region38: #{tpu_custom_call.1} parent=1 // pred_check
      _
    $region39: #{tpu_custom_call.1} parent=1 // pred_check_branch
      %37 = sbr.rel (0) target = $region41
    $region40: #{tpu_custom_call.1} parent=1 // pred_region
      _
    $region41: #{tpu_custom_call.1} parent=1 // pred_fallthru
      _
    // Predicated region
    $region42: #{tpu_custom_call.1} parent=1 // pred_check
      _
    $region43: #{tpu_custom_call.1} parent=1 // pred_check_branch
      %39 = sbr.rel (0) target = $region45
    $region44: #{tpu_custom_call.1} parent=1 // pred_region
      _
    $region45: #{tpu_custom_call.1} parent=1 // pred_fallthru
      _
    // Predicated region
    $region46: #{tpu_custom_call.1} parent=1 // pred_check
      _
    $region47: #{tpu_custom_call.1} parent=1 // pred_check_branch
      %41 = sbr.rel (0) target = $region49
    $region48: #{tpu_custom_call.1} parent=1 // pred_region
      _
    $region49: #{tpu_custom_call.1} parent=1 // pred_fallthru
      _
    %v43 = vld [vmem:[%s0] sm:$0xf]
    %v44 = vld [vmem:[%s0 + $0x4] sm:$0xf]
    %v45 = vld [vmem:[%s1] sm:$0xff]
    %v46 = vld [vmem:[%s1 + $0x8] sm:$0xff]
    %v47 = vld [vmem:[%s2] sm:$0xff]
    %v48 = vld [vmem:[%s2 + $0x8] sm:$0xff]
    %v49 = vld [vmem:[%s11] sm:$0xf]
    %v50 = vld [vmem:[%s3] sm:$0xf]
    %v51 = vld [vmem:[%s3 + $0x4] sm:$0xf]
    %v52 = vld [vmem:[%s3 + $0x8] sm:$0xf]
    %v53 = vld [vmem:[%s3 + $0xc] sm:$0xf]
    %v54 = vld [vmem:[%s4] sm:$0x1]
    %v56 = vperm.slane %v54, 0
    %v60 = vunpack.c.l.b16 %v43
    %v61 = vunpack.c.l.b16 %v44
    %v62 = vpack.c.b16 %v61, %v60
    %v67 = vunpack.c.l.b16 %v50
    %v68 = vunpack.c.l.b16 %v51
    %v69 = vunpack.c.l.b16 %v52
    %v70 = vunpack.c.l.b16 %v53
    %v71 = vpack.c.b16 %v68, %v67
    %v72 = vpack.c.b16 %v70, %v69
    %vm75 = vcmask 261120
    %v77 = vsel %vm75, %v62, 0
    %79 = vmatpush.bf16.msra.mxu0 0
    %80 = vmatpush.bf16.msra.mxu0 0
    %81 = vmatpush.bf16.msra.mxu0 0
    %82 = vmatpush.bf16.msra.mxu0 0
    %83 = vmatpush.bf16.msra.mxu0 0
    %84 = vmatpush.bf16.msra.mxu0 0
    %85 = vmatpush.bf16.msra.mxu0 %v72
    %86 = vmatpush.bf16.msra.mxu0 %v71
    %87 = vmatmul.bf16.gmra.mxu0 %v77
    %v88 = vpop.f32.mrf.mxu0
    %v89 = vadd.f32 %v56, %v88
    %v90 = vpop.f32.mrf.mxu0
    %v91 = vadd.f32 %v56, %v90
    %92 = vdwg.mxu0
    %v93 = vpack.c.bf16 %v89, %v89
    %v94 = vpack.c.bf16 %v91, %v91
    %v95 = vld [vmem:[%s5] sm:$0xf]
    %v96 = vld [vmem:[%s5 + $0x4] sm:$0xf]
    %v97 = vld [vmem:[%s5 + $0x8] sm:$0xf]
    %v98 = vld [vmem:[%s5 + $0xc] sm:$0xf]
    %v99 = vld [vmem:[%s6] sm:$0x1]
    %v101 = vperm.slane %v99, 0
    %v105 = vunpack.c.l.b16 %v93
    %v106 = vunpack.c.l.b16 %v94
    %v107 = vpack.c.b16 %v106, %v105
    %v112 = vunpack.c.l.b16 %v95
    %v113 = vunpack.c.l.b16 %v96
    %v114 = vunpack.c.l.b16 %v97
    %v115 = vunpack.c.l.b16 %v98
    %v116 = vpack.c.b16 %v113, %v112
    %v117 = vpack.c.b16 %v115, %v114
    %v121 = vsel %vm75, %v107, 0
    %123 = vmatpush.bf16.msra.mxu0 0
    %124 = vmatpush.bf16.msra.mxu0 0
    %125 = vmatpush.bf16.msra.mxu0 0
    %126 = vmatpush.bf16.msra.mxu0 0
    %127 = vmatpush.bf16.msra.mxu0 0
    %128 = vmatpush.bf16.msra.mxu0 0
    %129 = vmatpush.bf16.msra.mxu0 %v117
    %130 = vmatpush.bf16.msra.mxu0 %v116
    %131 = vmatmul.bf16.gmra.mxu0 %v121
    %v132 = vpop.f32.mrf.mxu0
    %v133 = vadd.f32 %v101, %v132
    %v134 = vpop.f32.mrf.mxu0
    %v135 = vadd.f32 %v101, %v134
    %136 = vdwg.mxu0
    %v137 = vmul.f32 %v133, 0.35355338
    %v138 = vmul.f32 %v135, 0.35355338
    %140 = vset.pattern.permute.xlu0 0
    %141 = vperm.xlu0 %140, %v45
    %v142 = vpop.permute.xlu0 %141
    %145 = vset.pattern.permute.xlu0 0
    %146 = vperm.xlu0 %145, %v46
    %v147 = vpop.permute.xlu0 %146
    %v149 = vadd.f32 %v137, %v142
    %v150 = vadd.f32 %v138, %v147
    %vm151 = vcmask 31744
    %v152 = vsel %vm151, %v149, -inf
    %v153 = vrot.slane %v152, 4
    %v154 = vmax.f32 %v152, %v153
    %v155 = vrot.slane %v154, 2
    %v156 = vmax.f32 %v154, %v155
    %v157 = vrot.slane %v156, 1
    %v158 = vmax.f32 %v156, %v157
    %v159 = vsel %vm151, %v150, -inf
    %v160 = vrot.slane %v159, 4
    %v161 = vmax.f32 %v159, %v160
    %v162 = vrot.slane %v161, 2
    %v163 = vmax.f32 %v161, %v162
    %v164 = vrot.slane %v163, 1
    %v165 = vmax.f32 %v163, %v164
    %v166 = vsub.f32 %v149, %v158
    %v167 = vsub.f32 %v150, %v165
    %v168 = vmul.f32 %v166, 1.442695
    %v169 = vpow.pop %v168
    %v170 = vmul.f32 %v167, 1.442695
    %v171 = vpow.pop %v170
    %v172 = vsel %vm151, %v169, 0.0
    %v173 = vrot.slane %v172, 4
    %v174 = vadd.f32 %v172, %v173
    %v175 = vrot.slane %v174, 2
    %v176 = vadd.f32 %v174, %v175
    %v177 = vrot.slane %v176, 1
    %v178 = vadd.f32 %v176, %v177
    %v179 = vsel %vm151, %v171, 0.0
    %v180 = vrot.slane %v179, 4
    %v181 = vadd.f32 %v179, %v180
    %v182 = vrot.slane %v181, 2
    %v183 = vadd.f32 %v181, %v182
    %v184 = vrot.slane %v183, 1
    %v185 = vadd.f32 %v183, %v184
    %v186 = vrcp.pop %v178
    %v187 = vrcp.pop %v185
    %v188 = vmul.f32 %v169, %v186
    %v189 = vmul.f32 %v171, %v187
    %191 = vset.pattern.permute.xlu0 0
    %192 = vperm.xlu0 %191, %v47
    %v193 = vpop.permute.xlu0 %192
    %196 = vset.pattern.permute.xlu0 0
    %197 = vperm.xlu0 %196, %v48
    %v198 = vpop.permute.xlu0 %197
    %v200 = vmul.f32 %v188, %v193
    %v201 = vmul.f32 %v189, %v198
    %v202 = vpack.c.bf16 %v200, %v200
    %v203 = vpack.c.bf16 %v201, %v201
    %204 = vxpose.xlu0.c.b16.start [1/8] %v202, 128
    %205 = vxpose.xlu0.c.b16.cont [2/8] 0, 128
    %206 = vxpose.xlu0.c.b16.cont [3/8] 0, 128
    %207 = vxpose.xlu0.c.b16.cont [4/8] 0, 128
    %208 = vxpose.xlu0.c.b16.cont [5/8] 0, 128
    %209 = vxpose.xlu0.c.b16.cont [6/8] 0, 128
    %210 = vxpose.xlu0.c.b16.cont [7/8] 0, 128
    %211 = vxpose.xlu0.c.b16.end [8/8] 0, 128
    %v212 = vpop.trf.xlu0
    %v213 = vpop.trf.xlu0
    %v214 = vpop.trf.xlu0
    %v215 = vpop.trf.xlu0
    %v216 = vpop.trf.xlu0
    %v217 = vpop.trf.xlu0
    %v218 = vpop.trf.xlu0
    %v219 = vpop.trf.xlu0
    %vm220 = vcmask 64512
    %v222 = vsel %vm220, %v212, 0
    %vm224 = vcmask 1043456
    %v226 = vsel %vm224, %v93, 0
    %228 = vmatpush.bf16.msra.mxu0 0
    %229 = vmatpush.bf16.msra.mxu0 0
    %230 = vmatpush.bf16.msra.mxu0 0
    %231 = vmatpush.bf16.msra.mxu0 0
    %232 = vmatpush.bf16.msra.mxu0 0
    %233 = vmatpush.bf16.msra.mxu0 0
    %234 = vmatpush.bf16.msra.mxu0 0
    %235 = vmatpush.bf16.msra.mxu0 %v226
    %236 = vmatmul.bf16.gmra.mxu0 %v222
    %v237 = vpop.f32.mrf.mxu0
    %v238 = vadd.f32 0.0, %v237
    %v239 = vpop.f32.mrf.mxu0
    %240 = vdwg.mxu0
    %241 = vxpose.xlu0.c.b16.start [1/8] %v203, 128
    %242 = vxpose.xlu0.c.b16.cont [2/8] 0, 128
    %243 = vxpose.xlu0.c.b16.cont [3/8] 0, 128
    %244 = vxpose.xlu0.c.b16.cont [4/8] 0, 128
    %245 = vxpose.xlu0.c.b16.cont [5/8] 0, 128
    %246 = vxpose.xlu0.c.b16.cont [6/8] 0, 128
    %247 = vxpose.xlu0.c.b16.cont [7/8] 0, 128
    %248 = vxpose.xlu0.c.b16.end [8/8] 0, 128
    %v249 = vpop.trf.xlu0
    %v250 = vpop.trf.xlu0
    %v251 = vpop.trf.xlu0
    %v252 = vpop.trf.xlu0
    %v253 = vpop.trf.xlu0
    %v254 = vpop.trf.xlu0
    %v255 = vpop.trf.xlu0
    %v256 = vpop.trf.xlu0
    %v258 = vsel %vm220, %v249, 0
    %v261 = vsel %vm224, %v94, 0
    %263 = vmatpush.bf16.msra.mxu0 0
    %264 = vmatpush.bf16.msra.mxu0 0
    %265 = vmatpush.bf16.msra.mxu0 0
    %266 = vmatpush.bf16.msra.mxu0 0
    %267 = vmatpush.bf16.msra.mxu0 0
    %268 = vmatpush.bf16.msra.mxu0 0
    %269 = vmatpush.bf16.msra.mxu0 0
    %270 = vmatpush.bf16.msra.mxu0 %v261
    %271 = vmatmul.bf16.gmra.mxu0 %v258
    %v272 = vpop.f32.mrf.mxu0
    %v273 = vadd.f32 0.0, %v272
    %v274 = vpop.f32.mrf.mxu0
    %275 = vdwg.mxu0
    %v276 = vmul.f32 %v49, %v238
    %v277 = vmul.f32 %v49, %v273
    %vm278 = vcmask 257024
    %v279 = vsel %vm278, %v276, 0.0
    %v280 = vrot.slane %v279, 4
    %v281 = vadd.f32 %v279, %v280
    %v282 = vrot.slane %v281, 2
    %v283 = vadd.f32 %v281, %v282
    %v284 = vrot.slane %v283, 1
    %v285 = vadd.f32 %v283, %v284
    %v286 = vsel %vm278, %v277, 0.0
    %v287 = vrot.slane %v286, 4
    %v288 = vadd.f32 %v286, %v287
    %v289 = vrot.slane %v288, 2
    %v290 = vadd.f32 %v288, %v289
    %v291 = vrot.slane %v290, 1
    %v292 = vadd.f32 %v290, %v291
    %295 = vrot.lane.b32.xlu0 %v285, 32
    %v296 = vpop.permute.xlu0 %295
    %297 = vrot.lane.b32.xlu0 %v292, 32
    %v298 = vpop.permute.xlu0 %297
    %v301 = vmul.f32 %v89, %v296
    %v302 = vmul.f32 %v91, %v298
    %v303 = vpack.c.bf16 %v301, %v301
    %v304 = vpack.c.bf16 %v302, %v302
    %v305 = vld [vmem:[%s7] sm:$0xf]
    %v306 = vld [vmem:[%s7 + $0x4] sm:$0xf]
    %v307 = vld [vmem:[%s7 + $0x8] sm:$0xf]
    %v308 = vld [vmem:[%s7 + $0xc] sm:$0xf]
    %v309 = vld [vmem:[%s8] sm:$0x1]
    %v311 = vperm.slane %v309, 0
    %v315 = vunpack.c.l.b16 %v303
    %v316 = vunpack.c.l.b16 %v304
    %v317 = vpack.c.b16 %v316, %v315
    %318 = vrot.lane.b32.xlu0 %v317, 96
    %v319 = vpop.permute.xlu0 %318
    %v324 = vunpack.c.l.b16 %v305
    %v325 = vunpack.c.l.b16 %v306
    %v326 = vunpack.c.l.b16 %v307
    %v327 = vunpack.c.l.b16 %v308
    %v328 = vpack.c.b16 %v325, %v324
    %v329 = vpack.c.b16 %v327, %v326
    %v333 = vsel %vm75, %v319, 0
    %335 = vmatpush.bf16.msra.mxu0 0
    %336 = vmatpush.bf16.msra.mxu0 0
    %337 = vmatpush.bf16.msra.mxu0 0
    %338 = vmatpush.bf16.msra.mxu0 0
    %339 = vmatpush.bf16.msra.mxu0 0
    %340 = vmatpush.bf16.msra.mxu0 0
    %341 = vmatpush.bf16.msra.mxu0 %v329
    %342 = vmatpush.bf16.msra.mxu0 %v328
    %343 = vmatmul.bf16.gmra.mxu0 %v333
    %v344 = vpop.f32.mrf.mxu0
    %v345 = vadd.f32 %v311, %v344
    %v346 = vpop.f32.mrf.mxu0
    %v347 = vadd.f32 %v311, %v346
    %348 = vdwg.mxu0
    %v349 = vmul.f32 %v345, 0.35355338
    %v350 = vmul.f32 %v347, 0.35355338
    %v351 = vadd.f32 %v349, %v142
    %v352 = vadd.f32 %v350, %v147
    %v353 = vsel %vm151, %v351, -inf
    %v354 = vrot.slane %v353, 4
    %v355 = vmax.f32 %v353, %v354
    %v356 = vrot.slane %v355, 2
    %v357 = vmax.f32 %v355, %v356
    %v358 = vrot.slane %v357, 1
    %v359 = vmax.f32 %v357, %v358
    %v360 = vsel %vm151, %v352, -inf
    %v361 = vrot.slane %v360, 4
    %v362 = vmax.f32 %v360, %v361
    %v363 = vrot.slane %v362, 2
    %v364 = vmax.f32 %v362, %v363
    %v365 = vrot.slane %v364, 1
    %v366 = vmax.f32 %v364, %v365
    %v367 = vsub.f32 %v351, %v359
    %v368 = vsub.f32 %v352, %v366
    %v369 = vmul.f32 %v367, 1.442695
    %v370 = vpow.pop %v369
    %v371 = vmul.f32 %v368, 1.442695
    %v372 = vpow.pop %v371
    %v373 = vsel %vm151, %v370, 0.0
    %v374 = vrot.slane %v373, 4
    %v375 = vadd.f32 %v373, %v374
    %v376 = vrot.slane %v375, 2
    %v377 = vadd.f32 %v375, %v376
    %v378 = vrot.slane %v377, 1
    %v379 = vadd.f32 %v377, %v378
    %v380 = vsel %vm151, %v372, 0.0
    %v381 = vrot.slane %v380, 4
    %v382 = vadd.f32 %v380, %v381
    %v383 = vrot.slane %v382, 2
    %v384 = vadd.f32 %v382, %v383
    %v385 = vrot.slane %v384, 1
    %v386 = vadd.f32 %v384, %v385
    %v387 = vrcp.pop %v379
    %v388 = vrcp.pop %v386
    %v389 = vmul.f32 %v370, %v387
    %v390 = vmul.f32 %v372, %v388
    %v391 = vmul.f32 %v389, %v193
    %v392 = vmul.f32 %v390, %v198
    %v393 = vpack.c.bf16 %v391, %v391
    %v394 = vpack.c.bf16 %v392, %v392
    %395 = vxpose.xlu0.c.b16.start [1/8] %v393, 128
    %396 = vxpose.xlu0.c.b16.cont [2/8] 0, 128
    %397 = vxpose.xlu0.c.b16.cont [3/8] 0, 128
    %398 = vxpose.xlu0.c.b16.cont [4/8] 0, 128
    %399 = vxpose.xlu0.c.b16.cont [5/8] 0, 128
    %400 = vxpose.xlu0.c.b16.cont [6/8] 0, 128
    %401 = vxpose.xlu0.c.b16.cont [7/8] 0, 128
    %402 = vxpose.xlu0.c.b16.end [8/8] 0, 128
    %v403 = vpop.trf.xlu0
    %v404 = vpop.trf.xlu0
    %v405 = vpop.trf.xlu0
    %v406 = vpop.trf.xlu0
    %v407 = vpop.trf.xlu0
    %v408 = vpop.trf.xlu0
    %v409 = vpop.trf.xlu0
    %v410 = vpop.trf.xlu0
    %v411 = vpack.c.b16 %v315, %v315
    %412 = vrot.lane.b32.xlu0 %v411, 96
    %v413 = vpop.permute.xlu0 %412
    %v415 = vsel %vm220, %v403, 0
    %v418 = vsel %vm224, %v413, 0
    %420 = vmatpush.bf16.msra.mxu0 0
    %421 = vmatpush.bf16.msra.mxu0 0
    %422 = vmatpush.bf16.msra.mxu0 0
    %423 = vmatpush.bf16.msra.mxu0 0
    %424 = vmatpush.bf16.msra.mxu0 0
    %425 = vmatpush.bf16.msra.mxu0 0
    %426 = vmatpush.bf16.msra.mxu0 0
    %427 = vmatpush.bf16.msra.mxu0 %v418
    %428 = vmatmul.bf16.gmra.mxu0 %v415
    %v429 = vpop.f32.mrf.mxu0
    %v430 = vadd.f32 0.0, %v429
    %v431 = vpop.f32.mrf.mxu0
    %432 = vdwg.mxu0
    %433 = vxpose.xlu0.c.b16.start [1/8] %v394, 128
    %434 = vxpose.xlu0.c.b16.cont [2/8] 0, 128
    %435 = vxpose.xlu0.c.b16.cont [3/8] 0, 128
    %436 = vxpose.xlu0.c.b16.cont [4/8] 0, 128
    %437 = vxpose.xlu0.c.b16.cont [5/8] 0, 128
    %438 = vxpose.xlu0.c.b16.cont [6/8] 0, 128
    %439 = vxpose.xlu0.c.b16.cont [7/8] 0, 128
    %440 = vxpose.xlu0.c.b16.end [8/8] 0, 128
    %v441 = vpop.trf.xlu0
    %v442 = vpop.trf.xlu0
    %v443 = vpop.trf.xlu0
    %v444 = vpop.trf.xlu0
    %v445 = vpop.trf.xlu0
    %v446 = vpop.trf.xlu0
    %v447 = vpop.trf.xlu0
    %v448 = vpop.trf.xlu0
    %v449 = vpack.c.b16 %v316, %v316
    %450 = vrot.lane.b32.xlu0 %v449, 96
    %v451 = vpop.permute.xlu0 %450
    %v453 = vsel %vm220, %v441, 0
    %v456 = vsel %vm224, %v451, 0
    %458 = vmatpush.bf16.msra.mxu0 0
    %459 = vmatpush.bf16.msra.mxu0 0
    %460 = vmatpush.bf16.msra.mxu0 0
    %461 = vmatpush.bf16.msra.mxu0 0
    %462 = vmatpush.bf16.msra.mxu0 0
    %463 = vmatpush.bf16.msra.mxu0 0
    %464 = vmatpush.bf16.msra.mxu0 0
    %465 = vmatpush.bf16.msra.mxu0 %v456
    %466 = vmatmul.bf16.gmra.mxu0 %v453
    %v467 = vpop.f32.mrf.mxu0
    %v468 = vadd.f32 0.0, %v467
    %v469 = vpop.f32.mrf.mxu0
    %470 = vdwg.mxu0
    %v471 = vmul.f32 %v49, %v430
    %v472 = vmul.f32 %v49, %v468
    %v473 = vsel %vm278, %v471, 0.0
    %v474 = vrot.slane %v473, 4
    %v475 = vadd.f32 %v473, %v474
    %v476 = vrot.slane %v475, 2
    %v477 = vadd.f32 %v475, %v476
    %v478 = vrot.slane %v477, 1
    %v479 = vadd.f32 %v477, %v478
    %v480 = vsel %vm278, %v472, 0.0
    %v481 = vrot.slane %v480, 4
    %v482 = vadd.f32 %v480, %v481
    %v483 = vrot.slane %v482, 2
    %v484 = vadd.f32 %v482, %v483
    %v485 = vrot.slane %v484, 1
    %v486 = vadd.f32 %v484, %v485
    %v487 = vmul.f32 %v479, %v89
    %v488 = vmul.f32 %v486, %v91
    %v489 = vpack.c.bf16 %v488, %v487
    %v490 = vld [vmem:[%s9] sm:$0xf]
    %v491 = vld [vmem:[%s9 + $0x4] sm:$0xf]
    %v492 = vld [vmem:[%s9 + $0x8] sm:$0xf]
    %v493 = vld [vmem:[%s9 + $0xc] sm:$0xf]
    %v494 = vld [vmem:[%s10] sm:$0x1]
    %v496 = vperm.slane %v494, 0
    %v502 = vunpack.c.l.b16 %v490
    %v503 = vunpack.c.l.b16 %v491
    %v504 = vunpack.c.l.b16 %v492
    %v505 = vunpack.c.l.b16 %v493
    %v506 = vpack.c.b16 %v503, %v502
    %v507 = vpack.c.b16 %v505, %v504
    %v511 = vsel %vm75, %v489, 0
    %513 = vmatpush.bf16.msra.mxu0 0
    %514 = vmatpush.bf16.msra.mxu0 0
    %515 = vmatpush.bf16.msra.mxu0 0
    %516 = vmatpush.bf16.msra.mxu0 0
    %517 = vmatpush.bf16.msra.mxu0 0
    %518 = vmatpush.bf16.msra.mxu0 0
    %519 = vmatpush.bf16.msra.mxu0 %v507
    %520 = vmatpush.bf16.msra.mxu0 %v506
    %521 = vmatmul.bf16.gmra.mxu0 %v511
    %v522 = vpop.f32.mrf.mxu0
    %v523 = vadd.f32 %v496, %v522
    %v524 = vpop.f32.mrf.mxu0
    %v525 = vadd.f32 %v496, %v524
    %526 = vdwg.mxu0
    %v527 = vadd.f32 %v523, %v89
    %v528 = vadd.f32 %v525, %v91
    %529 = vst.msk [vmem:[#allocation2] sm:$0xff] %vm75, %v527
    %530 = vst.msk [vmem:[#allocation2 + $0x8] sm:$0xff] %vm75, %v528
    // Predicated region
    $region50: #{tpu_custom_call.1} parent=1 // pred_check
      _
    $region51: #{tpu_custom_call.1} parent=1 // pred_check_branch
      %532 = sbr.rel (0) target = $region53
    $region52: #{tpu_custom_call.1} parent=1 // pred_region
      %534 = vsyncadd [#allocation3], 0
      %s535 = sshll.u32 [#allocation2], 4
      %s536 = int_to_ptr.vmem [resolvable:$true] %s535
      %s537 = sshll.u32 %s12, 4
      %s538 = int_to_ptr.hbm [resolvable:$true] %s537
      %543 = dma.vmem_to_hbm [thread:$0]  %s536, 256, %s538, [#allocation3], 128, 128, 8
    $region53: #{tpu_custom_call.1} parent=1 // pred_fallthru
      _
    // Predicated region
    $region54: #{tpu_custom_call.1} parent=1 // pred_check
      _
    $region55: #{tpu_custom_call.1} parent=1 // pred_check_branch
      %545 = sbr.rel (0) target = $region57
    $region56: #{tpu_custom_call.1} parent=1 // pred_region
      %547 = dma.done [#allocation3], 256
    $region57: #{tpu_custom_call.1} parent=1 // pred_fallthru
      _
    %548 = vsyncpa [#allocation3], 1

</llo_original>
